<compile_context>
chip_gen: v7x
topology: tpu7x:2x2x1
jax: 0.10.0
libtpu: 0.0.40
codegen_flags: <defaults>
</compile_context>

<pallas_src>
import jax
import jax.numpy as jnp
from jax.experimental import pallas as pl
from jax.experimental.pallas import tpu as pltpu

EPS = 1e-6
ALPHA = 5.0
BETA = 10.0
OHEM_RATIO = 3.0

_LANE = 512                      # lane-dense trailing dim (multiple of 128)
_NUM_TERMS = 8                   # number of masked global sums accumulated
_SUB = 8                         # sublanes kept per term in the partial accumulator
_NUM_CORE_SPLITS = 2             # "parallel" leading grid axis (v7x megacore; no-op on 1 TC)
_VMEM_INPUT_BUDGET = 28 << 20    # target double-buffered input footprint
_VMEM_LIMIT_BYTES = 48 << 20     # <= v7x 64 MiB physical VMEM, plenty on v5e/v6e


def _round_up(x, m):
    return (x + m - 1) // m * m


def _db_reduce_kernel(shrink_ref, thresh_ref, binary_ref,
                      gt_t_ref, mask_t_ref, gt_s_ref, mask_s_ref,
                      acc_ref):
    """Accumulates per-lane/sublane partials of the 8 masked reductions into acc_ref.

    acc_ref: (64, _LANE) f32 output block, revisited across the reduction axis.
    Rows [8k : 8k+8] hold the sublane-folded partial sum of term k:
      [0] shrink * gt_s * mask_s      (dice-shrink intersection)
      [1] shrink * mask_s             (dice-shrink pred term)
      [2] gt_s * mask_s               (dice gt term == positive map)
      [3] (1 - gt_s) * mask_s         (negative map / OHEM pool size)
      [4] |thresh - gt_t| * mask_t    (MaskL1 numerator)
      [5] mask_t                      (MaskL1 denominator)
      [6] binary * gt_s * mask_s      (dice-binary intersection)
      [7] binary * mask_s             (dice-binary pred term)
    """
    @pl.when(pl.program_id(1) == 0)
    def _():
        acc_ref[...] = jnp.zeros_like(acc_ref)

    shrink = shrink_ref[...].astype(jnp.float32)
    thresh = thresh_ref[...].astype(jnp.float32)
    binary = binary_ref[...].astype(jnp.float32)
    gt_t = gt_t_ref[...].astype(jnp.float32)
    mask_t = mask_t_ref[...].astype(jnp.float32)
    gt_s = gt_s_ref[...].astype(jnp.float32)
    mask_s = mask_s_ref[...].astype(jnp.float32)

    # Shared products (cuts VPU work).
    gm = gt_s * mask_s
    s_ms = shrink * mask_s
    b_ms = binary * mask_s

    terms = (
        s_ms * gt_s,                      # [0]
        s_ms,                             # [1]
        gm,                               # [2]
        mask_s - gm,                      # [3] == (1 - gt_s) * mask_s
        jnp.abs(thresh - gt_t) * mask_t,  # [4]
        mask_t,                           # [5]
        b_ms * gt_s,                      # [6]
        b_ms,                             # [7]
    )
    r_blk = shrink.shape[0]
    # Tile-granularity (r_blk/8, 8, _LANE) split is layout-free; summing over the
    # leading axis is pure VPU full-vreg adds (no XLU cross-sublane reduce).  The
    # concat of 8 sublane-aligned (8, _LANE) blocks gives one dense (64, _LANE)
    # unmasked full-tile accumulate.
    folds = [jnp.sum(t.reshape(r_blk // _SUB, _SUB, _LANE), axis=0) for t in terms]
    acc_ref[...] += jnp.concatenate(folds, axis=0)


def _run_reductions(shrink, thresh, binary, gt_t, mask_t, gt_s, mask_s):
    arrays = (shrink, thresh, binary, gt_t, mask_t, gt_s, mask_s)
    total = shrink.size

    # Largest row block that keeps the double-buffered input working set under
    # budget, at the inputs' native dtypes.
    bytes_per_elem = sum(jnp.dtype(a.dtype).itemsize for a in arrays)
    bytes_per_row = 2 * _LANE * bytes_per_elem
    r_max = max(8, min(2048, (_VMEM_INPUT_BUDGET // bytes_per_row) // 8 * 8))

    rows = pl.cdiv(total, _LANE)
    rows_per_core = pl.cdiv(rows, _NUM_CORE_SPLITS)
    tiles_per_core = max(1, pl.cdiv(rows_per_core, r_max))
    r_blk = _round_up(max(8, pl.cdiv(rows_per_core, tiles_per_core)), 8)
    rows_padded = _NUM_CORE_SPLITS * tiles_per_core * r_blk
    total_padded = rows_padded * _LANE

    def flat(x):
        # Zero padding is exact: every reduced term carries a mask/label factor
        # that is zero in the padded region.  Keep native dtype (no f32 HBM copy).
        x = x.reshape(-1)
        if total_padded != total:
            x = jnp.pad(x, (0, total_padded - total))
        return x.reshape(rows_padded, _LANE)

    args = tuple(flat(a) for a in arrays)

    in_spec = pl.BlockSpec((r_blk, _LANE),
                           lambda c, i: (c * tiles_per_core + i, 0))
    out_spec = pl.BlockSpec((None, _NUM_TERMS * _SUB, _LANE), lambda c, i: (c, 0, 0))

    partials = pl.pallas_call(
        _db_reduce_kernel,
        out_shape=jax.ShapeDtypeStruct(
            (_NUM_CORE_SPLITS, _NUM_TERMS * _SUB, _LANE), jnp.float32),
        grid=(_NUM_CORE_SPLITS, tiles_per_core),
        in_specs=[in_spec] * 7,
        out_specs=out_spec,
        compiler_params=pltpu.CompilerParams(
            dimension_semantics=("parallel", "arbitrary"),
            vmem_limit_bytes=_VMEM_LIMIT_BYTES),
    )(*args)
    # Tiny final reduce in JAX: (NC, 8 terms, 8 sublanes, LANE) -> (8,)
    return jnp.sum(
        partials.reshape(_NUM_CORE_SPLITS, _NUM_TERMS, _SUB, _LANE),
        axis=(0, 2, 3))


@jax.jit
def db_loss(maps, label_threshold_map, label_threshold_mask,
            label_shrink_map, label_shrink_mask):
    """JAX/Pallas equivalent of DBLoss.forward (no 'distance_maps' branch)."""
    shrink_maps = maps[:, 0, :, :]
    threshold_maps = maps[:, 1, :, :]
    binary_maps = maps[:, 2, :, :]

    sums = _run_reductions(
        shrink_maps, threshold_maps, binary_maps,
        label_threshold_map, label_threshold_mask,
        label_shrink_map, label_shrink_mask)

    s_inter, s_pred, s_gt, neg_sum, l1_num, l1_den, b_inter, b_pred = (
        sums[0], sums[1], sums[2], sums[3], sums[4], sums[5], sums[6], sums[7])

    # --- BalanceLoss (main_loss_type='DiceLoss') on shrink maps ---
    dice_shrink = 1.0 - 2.0 * s_inter / (s_pred + s_gt + EPS)
    positive_count = jnp.floor(s_gt).astype(jnp.int32)            # int(positive.sum())
    negative_count = jnp.floor(
        jnp.minimum(neg_sum, positive_count.astype(jnp.float32) * OHEM_RATIO)
    ).astype(jnp.int32)                                           # int(min(neg.sum(), pos*3))

    positive_loss_sum = dice_shrink * s_gt                        # (positive * loss).sum()
    # TODO(synk): the data-dependent OHEM sort/top-k has no Pallas equivalent; with
    # binary shrink label/mask (the DB training label format) every negative-loss
    # entry is either 0 or the scalar dice value (>= 0), so the descending top-k sum
    # is exactly dice_shrink * negative_count -- computed in closed form, no sort.
    neg_topk_sum = jnp.maximum(dice_shrink, 0.0) * negative_count.astype(jnp.float32)

    denom_pos_neg = (positive_count + negative_count).astype(jnp.float32) + EPS
    denom_pos = positive_count.astype(jnp.float32) + EPS
    balance = jnp.where(negative_count > 0,
                        (positive_loss_sum + neg_topk_sum) / denom_pos_neg,
                        positive_loss_sum / denom_pos)

    # --- MaskL1Loss on threshold maps ---
    l1 = l1_num / (l1_den + EPS)

    # --- DiceLoss on binary maps ---
    dice_binary = 1.0 - 2.0 * b_inter / (b_pred + s_gt + EPS)

    loss_shrink_maps = ALPHA * balance
    loss_threshold_maps = BETA * l1
    loss_binary_maps = dice_binary
    cbn_loss = jnp.array([0.0], dtype=jnp.float32)                # no 'distance_maps' key

    loss_all = loss_shrink_maps + loss_threshold_maps + loss_binary_maps
    return {
        'loss': loss_all + cbn_loss,
        'loss_shrink_maps': loss_shrink_maps,
        'loss_threshold_maps': loss_threshold_maps,
        'loss_binary_maps': loss_binary_maps,
        'loss_cbn': cbn_loss,
    }


def _reference_db_loss(maps, lt_map, lt_mask, ls_map, ls_mask):
    """Pure-JAX reference replicating the PyTorch module (sort-based OHEM)."""
    shrink = maps[:, 0]
    thresh = maps[:, 1]
    binary = maps[:, 2]
    inter = jnp.sum(shrink * ls_map * ls_mask)
    union = jnp.sum(shrink * ls_mask) + jnp.sum(ls_map * ls_mask) + EPS
    dice_s = 1.0 - 2.0 * inter / union
    positive = ls_map * ls_mask
    negative = (1.0 - ls_map) * ls_mask
    pos_cnt = jnp.floor(positive.sum()).astype(jnp.int32)
    neg_cnt = jnp.floor(jnp.minimum(negative.sum(),
                                    pos_cnt.astype(jnp.float32) * OHEM_RATIO)).astype(jnp.int32)
    pos_loss = (positive * dice_s).sum()
    srt = jnp.sort((negative * dice_s).reshape(-1))[::-1]
    topk = jnp.sum(jnp.where(jnp.arange(srt.shape[0]) < neg_cnt, srt, 0.0))
    balance = jnp.where(neg_cnt > 0,
                        (pos_loss + topk) / ((pos_cnt + neg_cnt).astype(jnp.float32) + EPS),
                        pos_loss / (pos_cnt.astype(jnp.float32) + EPS))
    l1 = (jnp.abs(thresh - lt_map) * lt_mask).sum() / (lt_mask.sum() + EPS)
    inter_b = jnp.sum(binary * ls_map * ls_mask)
    union_b = jnp.sum(binary * ls_mask) + jnp.sum(ls_map * ls_mask) + EPS
    dice_b = 1.0 - 2.0 * inter_b / union_b
    loss_all = ALPHA * balance + BETA * l1 + dice_b
    return loss_all


if __name__ == "__main__":
    key = jax.random.PRNGKey(0)
    N, C, H, W = 2, 3, 16, 16   # DB head always emits 3 channels (shrink/threshold/binary)

    k1, k2, k3, k4, k5 = jax.random.split(key, 5)
    maps = jax.nn.sigmoid(jax.random.normal(k1, (N, C, H, W), dtype=jnp.float32))
    label_threshold_map = jax.random.uniform(k2, (N, H, W), dtype=jnp.float32)
    label_threshold_mask = (jax.random.uniform(k3, (N, H, W)) > 0.3).astype(jnp.float32)
    label_shrink_map = (jax.random.uniform(k4, (N, H, W)) > 0.7).astype(jnp.float32)
    label_shrink_mask = (jax.random.uniform(k5, (N, H, W)) > 0.2).astype(jnp.float32)

    losses = db_loss(maps, label_threshold_map, label_threshold_mask,
                     label_shrink_map, label_shrink_mask)
    losses = jax.tree_util.tree_map(jax.block_until_ready, losses)

    ref_loss_all = _reference_db_loss(maps, label_threshold_map, label_threshold_mask,
                                      label_shrink_map, label_shrink_mask)
    assert losses['loss'].shape == (1,)
    assert jnp.allclose(losses['loss'][0], ref_loss_all, rtol=1e-4, atol=1e-5), (
        losses['loss'][0], ref_loss_all)

    print("KERNEL_OK")
</pallas_src>

<mosaic_0001>
module attributes {stable_mosaic.version = 11 : i64} {
  func.func @_db_reduce_kernel(%arg0: i32, %arg1: i32, %arg2: memref<8x512xf32, #tpu.memory_space<vmem>>, %arg3: memref<8x512xf32, #tpu.memory_space<vmem>>, %arg4: memref<8x512xf32, #tpu.memory_space<vmem>>, %arg5: memref<8x512xf32, #tpu.memory_space<vmem>>, %arg6: memref<8x512xf32, #tpu.memory_space<vmem>>, %arg7: memref<8x512xf32, #tpu.memory_space<vmem>>, %arg8: memref<8x512xf32, #tpu.memory_space<vmem>>, %arg9: memref<1x64x512xf32, #tpu.memory_space<vmem>>) attributes {dimension_semantics = [#tpu.dimension_semantics<parallel>, #tpu.dimension_semantics<arbitrary>], iteration_bounds = array<i64: 2, 1>, scalar_prefetch = 0 : i64, scratch_operands = 0 : i64, tpu.core_type = #tpu.core_type<tc>, window_params = [{transform_indices = @transform_0, window_bounds = array<i64: 8, 512>}, {transform_indices = @transform_1, window_bounds = array<i64: 8, 512>}, {transform_indices = @transform_2, window_bounds = array<i64: 8, 512>}, {transform_indices = @transform_3, window_bounds = array<i64: 8, 512>}, {transform_indices = @transform_4, window_bounds = array<i64: 8, 512>}, {transform_indices = @transform_5, window_bounds = array<i64: 8, 512>}, {transform_indices = @transform_6, window_bounds = array<i64: 8, 512>}, {transform_indices = @transform_7, window_bounds = array<i64: 1, 64, 512>}]} {
    %c0_i32 = arith.constant 0 : i32
    %0 = arith.cmpi eq, %arg1, %c0_i32 : i32
    %1 = arith.extui %0 : i1 to i32
    %c0_i32_0 = arith.constant 0 : i32
    %2 = arith.cmpi ne, %1, %c0_i32_0 : i32
    scf.if %2 {
      %cst_27 = arith.constant 0.000000e+00 : f32
      %42 = vector.broadcast %cst_27 : f32 to vector<64x512xf32>
      %c0_28 = arith.constant 0 : index
      %c0_29 = arith.constant 0 : index
      %c0_30 = arith.constant 0 : index
      %43 = vector.load %arg9[%c0_28, %c0_29, %c0_30] : memref<1x64x512xf32, #tpu.memory_space<vmem>>, vector<1x64x512xf32>
      %44 = vector.shape_cast %43 : vector<1x64x512xf32> to vector<64x512xf32>
      %45 = vector.shape_cast %42 : vector<64x512xf32> to vector<1x64x512xf32>
      tpu.vector_store %arg9[%c0_28, %c0_29, %c0_30], %45 {strides = array<i32>} : memref<1x64x512xf32, #tpu.memory_space<vmem>>, vector<1x64x512xf32>,
    } else {
    }
    %c0 = arith.constant 0 : index
    %c0_1 = arith.constant 0 : index
    %3 = vector.load %arg2[%c0, %c0_1] : memref<8x512xf32, #tpu.memory_space<vmem>>, vector<8x512xf32>
    %c0_2 = arith.constant 0 : index
    %c0_3 = arith.constant 0 : index
    %4 = vector.load %arg3[%c0_2, %c0_3] : memref<8x512xf32, #tpu.memory_space<vmem>>, vector<8x512xf32>
    %c0_4 = arith.constant 0 : index
    %c0_5 = arith.constant 0 : index
    %5 = vector.load %arg4[%c0_4, %c0_5] : memref<8x512xf32, #tpu.memory_space<vmem>>, vector<8x512xf32>
    %c0_6 = arith.constant 0 : index
    %c0_7 = arith.constant 0 : index
    %6 = vector.load %arg5[%c0_6, %c0_7] : memref<8x512xf32, #tpu.memory_space<vmem>>, vector<8x512xf32>
    %c0_8 = arith.constant 0 : index
    %c0_9 = arith.constant 0 : index
    %7 = vector.load %arg6[%c0_8, %c0_9] : memref<8x512xf32, #tpu.memory_space<vmem>>, vector<8x512xf32>
    %c0_10 = arith.constant 0 : index
    %c0_11 = arith.constant 0 : index
    %8 = vector.load %arg7[%c0_10, %c0_11] : memref<8x512xf32, #tpu.memory_space<vmem>>, vector<8x512xf32>
    %c0_12 = arith.constant 0 : index
    %c0_13 = arith.constant 0 : index
    %9 = vector.load %arg8[%c0_12, %c0_13] : memref<8x512xf32, #tpu.memory_space<vmem>>, vector<8x512xf32>
    %10 = arith.mulf %8, %9 : vector<8x512xf32>
    %11 = arith.mulf %3, %9 : vector<8x512xf32>
    %12 = arith.mulf %5, %9 : vector<8x512xf32>
    %13 = arith.mulf %11, %8 : vector<8x512xf32>
    %14 = arith.subf %9, %10 : vector<8x512xf32>
    %15 = arith.subf %4, %6 : vector<8x512xf32>
    %16 = math.absf %15 : vector<8x512xf32>
    %17 = arith.mulf %16, %7 : vector<8x512xf32>
    %18 = arith.mulf %12, %8 : vector<8x512xf32>
    %19 = vector.shape_cast %13 : vector<8x512xf32> to vector<1x8x512xf32>
    %cst = arith.constant dense<0.000000e+00> : vector<8x512xf32>
    %20 = vector.multi_reduction <add>, %19, %cst [0] : vector<1x8x512xf32> to vector<8x512xf32>
    %21 = vector.shape_cast %11 : vector<8x512xf32> to vector<1x8x512xf32>
    %cst_14 = arith.constant dense<0.000000e+00> : vector<8x512xf32>
    %22 = vector.multi_reduction <add>, %21, %cst_14 [0] : vector<1x8x512xf32> to vector<8x512xf32>
    %23 = vector.shape_cast %10 : vector<8x512xf32> to vector<1x8x512xf32>
    %cst_15 = arith.constant dense<0.000000e+00> : vector<8x512xf32>
    %24 = vector.multi_reduction <add>, %23, %cst_15 [0] : vector<1x8x512xf32> to vector<8x512xf32>
    %25 = vector.shape_cast %14 : vector<8x512xf32> to vector<1x8x512xf32>
    %cst_16 = arith.constant dense<0.000000e+00> : vector<8x512xf32>
    %26 = vector.multi_reduction <add>, %25, %cst_16 [0] : vector<1x8x512xf32> to vector<8x512xf32>
    %27 = vector.shape_cast %17 : vector<8x512xf32> to vector<1x8x512xf32>
    %cst_17 = arith.constant dense<0.000000e+00> : vector<8x512xf32>
    %28 = vector.multi_reduction <add>, %27, %cst_17 [0] : vector<1x8x512xf32> to vector<8x512xf32>
    %29 = vector.shape_cast %7 : vector<8x512xf32> to vector<1x8x512xf32>
    %cst_18 = arith.constant dense<0.000000e+00> : vector<8x512xf32>
    %30 = vector.multi_reduction <add>, %29, %cst_18 [0] : vector<1x8x512xf32> to vector<8x512xf32>
    %31 = vector.shape_cast %18 : vector<8x512xf32> to vector<1x8x512xf32>
    %cst_19 = arith.constant dense<0.000000e+00> : vector<8x512xf32>
    %32 = vector.multi_reduction <add>, %31, %cst_19 [0] : vector<1x8x512xf32> to vector<8x512xf32>
    %33 = vector.shape_cast %12 : vector<8x512xf32> to vector<1x8x512xf32>
    %cst_20 = arith.constant dense<0.000000e+00> : vector<8x512xf32>
    %34 = vector.multi_reduction <add>, %33, %cst_20 [0] : vector<1x8x512xf32> to vector<8x512xf32>
    %c0_21 = arith.constant 0 : index
    %c0_22 = arith.constant 0 : index
    %c0_23 = arith.constant 0 : index
    %35 = vector.load %arg9[%c0_21, %c0_22, %c0_23] : memref<1x64x512xf32, #tpu.memory_space<vmem>>, vector<1x64x512xf32>
    %36 = vector.shape_cast %35 : vector<1x64x512xf32> to vector<64x512xf32>
    %37 = tpu.concatenate %20, %22, %24, %26, %28, %30, %32, %34 in 0 : vector<8x512xf32>, vector<8x512xf32>, vector<8x512xf32>, vector<8x512xf32>, vector<8x512xf32>, vector<8x512xf32>, vector<8x512xf32>, vector<8x512xf32> -> vector<64x512xf32>
    %38 = arith.addf %36, %37 : vector<64x512xf32>
    %c0_24 = arith.constant 0 : index
    %c0_25 = arith.constant 0 : index
    %c0_26 = arith.constant 0 : index
    %39 = vector.load %arg9[%c0_24, %c0_25, %c0_26] : memref<1x64x512xf32, #tpu.memory_space<vmem>>, vector<1x64x512xf32>
    %40 = vector.shape_cast %39 : vector<1x64x512xf32> to vector<64x512xf32>
    %41 = vector.shape_cast %38 : vector<64x512xf32> to vector<1x64x512xf32>
    tpu.vector_store %arg9[%c0_24, %c0_25, %c0_26], %41 {strides = array<i32>} : memref<1x64x512xf32, #tpu.memory_space<vmem>>, vector<1x64x512xf32>,
    return
  }
  func.func @transform_0(%arg0: i32, %arg1: i32) -> (i32, i32) {
    %c1_i32 = arith.constant 1 : i32
    %0 = arith.muli %arg0, %c1_i32 : i32
    %1 = arith.addi %0, %arg1 : i32
    %c0_i32 = arith.constant 0 : i32
    %c0_i32_0 = arith.constant 0 : i32
    return %1, %c0_i32 : i32, i32
  }
  func.func @transform_1(%arg0: i32, %arg1: i32) -> (i32, i32) {
    %c1_i32 = arith.constant 1 : i32
    %0 = arith.muli %arg0, %c1_i32 : i32
    %1 = arith.addi %0, %arg1 : i32
    %c0_i32 = arith.constant 0 : i32
    %c0_i32_0 = arith.constant 0 : i32
    return %1, %c0_i32 : i32, i32
  }
  func.func @transform_2(%arg0: i32, %arg1: i32) -> (i32, i32) {
    %c1_i32 = arith.constant 1 : i32
    %0 = arith.muli %arg0, %c1_i32 : i32
    %1 = arith.addi %0, %arg1 : i32
    %c0_i32 = arith.constant 0 : i32
    %c0_i32_0 = arith.constant 0 : i32
    return %1, %c0_i32 : i32, i32
  }
  func.func @transform_3(%arg0: i32, %arg1: i32) -> (i32, i32) {
    %c1_i32 = arith.constant 1 : i32
    %0 = arith.muli %arg0, %c1_i32 : i32
    %1 = arith.addi %0, %arg1 : i32
    %c0_i32 = arith.constant 0 : i32
    %c0_i32_0 = arith.constant 0 : i32
    return %1, %c0_i32 : i32, i32
  }
  func.func @transform_4(%arg0: i32, %arg1: i32) -> (i32, i32) {
    %c1_i32 = arith.constant 1 : i32
    %0 = arith.muli %arg0, %c1_i32 : i32
    %1 = arith.addi %0, %arg1 : i32
    %c0_i32 = arith.constant 0 : i32
    %c0_i32_0 = arith.constant 0 : i32
    return %1, %c0_i32 : i32, i32
  }
  func.func @transform_5(%arg0: i32, %arg1: i32) -> (i32, i32) {
    %c1_i32 = arith.constant 1 : i32
    %0 = arith.muli %arg0, %c1_i32 : i32
    %1 = arith.addi %0, %arg1 : i32
    %c0_i32 = arith.constant 0 : i32
    %c0_i32_0 = arith.constant 0 : i32
    return %1, %c0_i32 : i32, i32
  }
  func.func @transform_6(%arg0: i32, %arg1: i32) -> (i32, i32) {
    %c1_i32 = arith.constant 1 : i32
    %0 = arith.muli %arg0, %c1_i32 : i32
    %1 = arith.addi %0, %arg1 : i32
    %c0_i32 = arith.constant 0 : i32
    %c0_i32_0 = arith.constant 0 : i32
    return %1, %c0_i32 : i32, i32
  }
  func.func @transform_7(%arg0: i32, %arg1: i32) -> (i32, i32, i32) {
    %c0_i32 = arith.constant 0 : i32
    %c0_i32_0 = arith.constant 0 : i32
    %c0_i32_1 = arith.constant 0 : i32
    return %arg0, %c0_i32, %c0_i32_0 : i32, i32, i32
  }
}

</mosaic_0001>

<llo_original>
// kernel: squeeze.11
$region0: #{squeeze.11}
  %s0 = inlined_call_operand.vmem [shape: f32[2,1,16,16], index: 0, kind: input, shape index: {}]
  %s1 = inlined_call_operand.vmem [shape: f32[512], index: 1, kind: output, shape index: {}]
  $region1: #{squeeze.11} parent=0
    #allocation0 [shape = 'u8[4096]{0}', space=vmem, size = 0x1000, scoped, tag = 'scoped mem for output reshape']
    %v2 = vld [vmem:[%s0] ss:$8 sm:$0xf]
    %vm3 = vcmask 130048
    %4 = vst.msk [vmem:[#allocation0] sm:$0xf] %vm3, %v2
    %s5 = scalar_lea.vmem %s0, 7
    %v6 = vld [vmem:[%s5] ss:$8 sm:$0xf]
    %7 = vrot.lane.b32.xlu0 %v6, 112
    %v8 = vpop.permute.xlu0 %7
    %vm9 = vcmask 1048448
    %10 = vst.msk [vmem:[#allocation0] sm:$0xf] %vm9, %v8
    %s11 = scalar_lea.vmem %s0, 6
    %v12 = vld [vmem:[%s11] ss:$8 sm:$0xf]
    %13 = vrot.lane.b32.xlu0 %v12, 96
    %v14 = vpop.permute.xlu0 %13
    %vm15 = vcmask 917248
    %16 = vst.msk [vmem:[#allocation0] sm:$0xf] %vm15, %v14
    %s17 = scalar_lea.vmem %s0, 5
    %v18 = vld [vmem:[%s17] ss:$8 sm:$0xf]
    %19 = vrot.lane.b32.xlu0 %v18, 80
    %v20 = vpop.permute.xlu0 %19
    %vm21 = vcmask 786048
    %22 = vst.msk [vmem:[#allocation0] sm:$0xf] %vm21, %v20
    %s23 = scalar_lea.vmem %s0, 4
    %v24 = vld [vmem:[%s23] ss:$8 sm:$0xf]
    %25 = vrot.lane.b32.xlu0 %v24, 64
    %v26 = vpop.permute.xlu0 %25
    %vm27 = vcmask 654848
    %28 = vst.msk [vmem:[#allocation0] sm:$0xf] %vm27, %v26
    %s29 = scalar_lea.vmem %s0, 3
    %v30 = vld [vmem:[%s29] ss:$8 sm:$0xf]
    %31 = vrot.lane.b32.xlu0 %v30, 48
    %v32 = vpop.permute.xlu0 %31
    %vm33 = vcmask 523648
    %34 = vst.msk [vmem:[#allocation0] sm:$0xf] %vm33, %v32
    %s35 = scalar_lea.vmem %s0, 2
    %v36 = vld [vmem:[%s35] ss:$8 sm:$0xf]
    %37 = vrot.lane.b32.xlu0 %v36, 32
    %v38 = vpop.permute.xlu0 %37
    %vm39 = vcmask 392448
    %40 = vst.msk [vmem:[#allocation0] sm:$0xf] %vm39, %v38
    %s41 = scalar_lea.vmem %s0, 1
    %v42 = vld [vmem:[%s41] ss:$8 sm:$0xf]
    %43 = vrot.lane.b32.xlu0 %v42, 16
    %v44 = vpop.permute.xlu0 %43
    %vm45 = vcmask 261248
    %46 = vst.msk [vmem:[#allocation0] sm:$0xf] %vm45, %v44
    %s48 = sshllo.u32 0, 4
    %v50 = vld [vmem:[#allocation0] sm:%s48]
    %s51 = sshllo.u32 0, 4
    %52 = vst [vmem:[%s1] sm:%s51] %v50

// kernel: db_loss.1
$region0: #{db_loss.1}
  #allocation0 [shape = 'u32[]', space=smem, size = 0x4, offset = 0x4, fixed_abs, tag = 'smem constant byte address 0x4 - core index']
  #allocation1 [shape = 'u32[144,128]{1,0:T(1,128)}', space=vmem, size = 0x12000, scoped, tag = 'internal scratch']
  %s0 = inlined_call_operand.vmem [shape: f32[16,512], index: 0, kind: input, shape index: {}]
  %s1 = inlined_call_operand.vmem [shape: f32[16,512], index: 1, kind: input, shape index: {}]
  %s2 = inlined_call_operand.vmem [shape: f32[16,512], index: 2, kind: input, shape index: {}]
  %s3 = inlined_call_operand.vmem [shape: f32[16,512], index: 3, kind: input, shape index: {}]
  %s4 = inlined_call_operand.vmem [shape: f32[16,512], index: 4, kind: input, shape index: {}]
  %s5 = inlined_call_operand.vmem [shape: f32[16,512], index: 5, kind: input, shape index: {}]
  %s6 = inlined_call_operand.vmem [shape: f32[16,512], index: 6, kind: input, shape index: {}]
  %s7 = inlined_call_operand.vmem [shape: f32[2,64,512], index: 7, kind: output, shape index: {}]
  %s8 = sld [smem:[#allocation0]]
  $region65: #{db_loss.1} parent=0
    _
  %s10 = ssub.s32 1, %s8
  %s11 = scalar_select 0, %s10, %s8
  loop: start=0, step=1, limit=4
  $region2: #{db_loss.1} parent=0 // loop_pre_header
    _
  $region3: #{db_loss.1} parent=0 // loop_header
    %s13 = sphi 0, %s17
    %p14 = scmp.ge.s32.totalorder %s13, 4
    %s20 = sphi 0, %s32
    %s21 = sphi 0, %s28
    %s22 = sphi 0, %s20
    %s23 = sphi 0, %s21
    %s24 = sphi 0, %s22
    %s25 = sphi 0, %s23
    %s37 = sphi 0, %s39
    %s40 = sphi 0, %s37
    %s41 = sphi 0, %s40
    %s57 = sphi 0, %s41
    %s65 = sphi 0, %s67
    %s68 = sphi 0, %s65
    %s69 = sphi 0, %s68
    %s85 = sphi 0, %s69
    %s93 = sphi 0, %s95
    %s96 = sphi 0, %s93
    %s97 = sphi 0, %s96
    %s113 = sphi 0, %s97
    %s121 = sphi 0, %s123
    %s124 = sphi 0, %s121
    %s125 = sphi 0, %s124
    %s141 = sphi 0, %s125
    %s149 = sphi 0, %s151
    %s152 = sphi 0, %s149
    %s153 = sphi 0, %s152
    %s169 = sphi 0, %s153
    %s177 = sphi 0, %s179
    %s180 = sphi 0, %s177
    %s181 = sphi 0, %s180
    %s197 = sphi 0, %s181
    %s205 = sphi 0, %s207
    %s208 = sphi 0, %s205
    %s209 = sphi 0, %s208
    %s225 = sphi 0, %s209
    %s231 = sphi 0, %s233
    %s234 = sphi 0, %s231
    %s235 = sphi 0, %s234
    %s251 = sphi 0, %s235
  $region4: #{db_loss.1} parent=0 // loop_header_branch
    %16 = sbr.rel (%p14) target = $region8
  $region5: #{db_loss.1} parent=0 // loop_body
    %s18 = ssub.s32 %s13, 1
    %s19 = ssub.s32 %s13, 2
    %s26 = sadd.s32 1, %s21
    %p27 = scmp.ge.s32.totalorder %s26, 1
    %s28 = scalar_select %p27, 0, %s26
    %s29 = sadd.s32 1, %s20
    %s30 = scalar_select %p27, %s29, %s20
    %p31 = scmp.ge.s32.totalorder %s30, 2
    %s32 = scalar_select %p31, 0, %s30
    %s33 = sadd.s32 %s20, %s21
    %s34 = sadd.s32 %s32, %s28
    %s35 = ssub.s32 %s33, %s34
    %p36 = scmp.eq.s32.totalorder %s35, 0
    %s38 = sadd.s32 %s37, 1
    %s39 = scalar_select %p36, %s37, %s38
    %p42 = pneg %p36
    %p43 = scmp.eq.s32.totalorder %s13, 1
    %p44 = por %p42, %p43
    %p45 = scmp.ne.s32.totalorder %s37, %s40
    %p46 = scmp.eq.s32.totalorder %s13, 0
    %p47 = por %p45, %p46
    %p48 = scmp.ne.s32.totalorder %s37, %s40
    %p49 = scmp.eq.s32.totalorder %s18, 1
    %p50 = por %p48, %p49
    %p51 = scmp.ne.s32.totalorder %s40, %s41
    %p52 = scmp.eq.s32.totalorder %s18, 0
    %p53 = por %p51, %p52
    %p54 = scmp.ne.s32.totalorder %s40, %s41
    %p55 = scmp.eq.s32.totalorder %s19, 1
    %p56 = por %p54, %p55
    %p58 = scmp.ne.s32.totalorder %s41, %s57
    %p59 = scmp.eq.s32.totalorder %s19, 0
    %p60 = por %p58, %p59
    %s61 = sadd.s32 %s20, %s21
    %s62 = sadd.s32 %s32, %s28
    %s63 = ssub.s32 %s61, %s62
    %p64 = scmp.eq.s32.totalorder %s63, 0
    %s66 = sadd.s32 %s65, 1
    %s67 = scalar_select %p64, %s65, %s66
    %p70 = pneg %p64
    %p71 = scmp.eq.s32.totalorder %s13, 1
    %p72 = por %p70, %p71
    %p73 = scmp.ne.s32.totalorder %s65, %s68
    %p74 = scmp.eq.s32.totalorder %s13, 0
    %p75 = por %p73, %p74
    %p76 = scmp.ne.s32.totalorder %s65, %s68
    %p77 = scmp.eq.s32.totalorder %s18, 1
    %p78 = por %p76, %p77
    %p79 = scmp.ne.s32.totalorder %s68, %s69
    %p80 = scmp.eq.s32.totalorder %s18, 0
    %p81 = por %p79, %p80
    %p82 = scmp.ne.s32.totalorder %s68, %s69
    %p83 = scmp.eq.s32.totalorder %s19, 1
    %p84 = por %p82, %p83
    %p86 = scmp.ne.s32.totalorder %s69, %s85
    %p87 = scmp.eq.s32.totalorder %s19, 0
    %p88 = por %p86, %p87
    %s89 = sadd.s32 %s20, %s21
    %s90 = sadd.s32 %s32, %s28
    %s91 = ssub.s32 %s89, %s90
    %p92 = scmp.eq.s32.totalorder %s91, 0
    %s94 = sadd.s32 %s93, 1
    %s95 = scalar_select %p92, %s93, %s94
    %p98 = pneg %p92
    %p99 = scmp.eq.s32.totalorder %s13, 1
    %p100 = por %p98, %p99
    %p101 = scmp.ne.s32.totalorder %s93, %s96
    %p102 = scmp.eq.s32.totalorder %s13, 0
    %p103 = por %p101, %p102
    %p104 = scmp.ne.s32.totalorder %s93, %s96
    %p105 = scmp.eq.s32.totalorder %s18, 1
    %p106 = por %p104, %p105
    %p107 = scmp.ne.s32.totalorder %s96, %s97
    %p108 = scmp.eq.s32.totalorder %s18, 0
    %p109 = por %p107, %p108
    %p110 = scmp.ne.s32.totalorder %s96, %s97
    %p111 = scmp.eq.s32.totalorder %s19, 1
    %p112 = por %p110, %p111
    %p114 = scmp.ne.s32.totalorder %s97, %s113
    %p115 = scmp.eq.s32.totalorder %s19, 0
    %p116 = por %p114, %p115
    %s117 = sadd.s32 %s20, %s21
    %s118 = sadd.s32 %s32, %s28
    %s119 = ssub.s32 %s117, %s118
    %p120 = scmp.eq.s32.totalorder %s119, 0
    %s122 = sadd.s32 %s121, 1
    %s123 = scalar_select %p120, %s121, %s122
    %p126 = pneg %p120
    %p127 = scmp.eq.s32.totalorder %s13, 1
    %p128 = por %p126, %p127
    %p129 = scmp.ne.s32.totalorder %s121, %s124
    %p130 = scmp.eq.s32.totalorder %s13, 0
    %p131 = por %p129, %p130
    %p132 = scmp.ne.s32.totalorder %s121, %s124
    %p133 = scmp.eq.s32.totalorder %s18, 1
    %p134 = por %p132, %p133
    %p135 = scmp.ne.s32.totalorder %s124, %s125
    %p136 = scmp.eq.s32.totalorder %s18, 0
    %p137 = por %p135, %p136
    %p138 = scmp.ne.s32.totalorder %s124, %s125
    %p139 = scmp.eq.s32.totalorder %s19, 1
    %p140 = por %p138, %p139
    %p142 = scmp.ne.s32.totalorder %s125, %s141
    %p143 = scmp.eq.s32.totalorder %s19, 0
    %p144 = por %p142, %p143
    %s145 = sadd.s32 %s20, %s21
    %s146 = sadd.s32 %s32, %s28
    %s147 = ssub.s32 %s145, %s146
    %p148 = scmp.eq.s32.totalorder %s147, 0
    %s150 = sadd.s32 %s149, 1
    %s151 = scalar_select %p148, %s149, %s150
    %p154 = pneg %p148
    %p155 = scmp.eq.s32.totalorder %s13, 1
    %p156 = por %p154, %p155
    %p157 = scmp.ne.s32.totalorder %s149, %s152
    %p158 = scmp.eq.s32.totalorder %s13, 0
    %p159 = por %p157, %p158
    %p160 = scmp.ne.s32.totalorder %s149, %s152
    %p161 = scmp.eq.s32.totalorder %s18, 1
    %p162 = por %p160, %p161
    %p163 = scmp.ne.s32.totalorder %s152, %s153
    %p164 = scmp.eq.s32.totalorder %s18, 0
    %p165 = por %p163, %p164
    %p166 = scmp.ne.s32.totalorder %s152, %s153
    %p167 = scmp.eq.s32.totalorder %s19, 1
    %p168 = por %p166, %p167
    %p170 = scmp.ne.s32.totalorder %s153, %s169
    %p171 = scmp.eq.s32.totalorder %s19, 0
    %p172 = por %p170, %p171
    %s173 = sadd.s32 %s20, %s21
    %s174 = sadd.s32 %s32, %s28
    %s175 = ssub.s32 %s173, %s174
    %p176 = scmp.eq.s32.totalorder %s175, 0
    %s178 = sadd.s32 %s177, 1
    %s179 = scalar_select %p176, %s177, %s178
    %p182 = pneg %p176
    %p183 = scmp.eq.s32.totalorder %s13, 1
    %p184 = por %p182, %p183
    %p185 = scmp.ne.s32.totalorder %s177, %s180
    %p186 = scmp.eq.s32.totalorder %s13, 0
    %p187 = por %p185, %p186
    %p188 = scmp.ne.s32.totalorder %s177, %s180
    %p189 = scmp.eq.s32.totalorder %s18, 1
    %p190 = por %p188, %p189
    %p191 = scmp.ne.s32.totalorder %s180, %s181
    %p192 = scmp.eq.s32.totalorder %s18, 0
    %p193 = por %p191, %p192
    %p194 = scmp.ne.s32.totalorder %s180, %s181
    %p195 = scmp.eq.s32.totalorder %s19, 1
    %p196 = por %p194, %p195
    %p198 = scmp.ne.s32.totalorder %s181, %s197
    %p199 = scmp.eq.s32.totalorder %s19, 0
    %p200 = por %p198, %p199
    %s201 = sadd.s32 %s20, %s21
    %s202 = sadd.s32 %s32, %s28
    %s203 = ssub.s32 %s201, %s202
    %p204 = scmp.eq.s32.totalorder %s203, 0
    %s206 = sadd.s32 %s205, 1
    %s207 = scalar_select %p204, %s205, %s206
    %p210 = pneg %p204
    %p211 = scmp.eq.s32.totalorder %s13, 1
    %p212 = por %p210, %p211
    %p213 = scmp.ne.s32.totalorder %s205, %s208
    %p214 = scmp.eq.s32.totalorder %s13, 0
    %p215 = por %p213, %p214
    %p216 = scmp.ne.s32.totalorder %s205, %s208
    %p217 = scmp.eq.s32.totalorder %s18, 1
    %p218 = por %p216, %p217
    %p219 = scmp.ne.s32.totalorder %s208, %s209
    %p220 = scmp.eq.s32.totalorder %s18, 0
    %p221 = por %p219, %p220
    %p222 = scmp.ne.s32.totalorder %s208, %s209
    %p223 = scmp.eq.s32.totalorder %s19, 1
    %p224 = por %p222, %p223
    %p226 = scmp.ne.s32.totalorder %s209, %s225
    %p227 = scmp.eq.s32.totalorder %s19, 0
    %p228 = por %p226, %p227
    %s229 = ssub.s32 %s20, %s32
    %p230 = scmp.eq.s32.totalorder %s229, 0
    %s232 = sadd.s32 %s231, 1
    %s233 = scalar_select %p230, %s231, %s232
    %p236 = pneg %p230
    %p237 = scmp.eq.s32.totalorder %s13, 1
    %p238 = por %p236, %p237
    %p239 = scmp.ne.s32.totalorder %s231, %s234
    %p240 = scmp.eq.s32.totalorder %s13, 0
    %p241 = por %p239, %p240
    %p242 = scmp.ne.s32.totalorder %s231, %s234
    %p243 = scmp.eq.s32.totalorder %s18, 1
    %p244 = por %p242, %p243
    %p245 = scmp.ne.s32.totalorder %s234, %s235
    %p246 = scmp.eq.s32.totalorder %s18, 0
    %p247 = por %p245, %p246
    %p248 = scmp.ne.s32.totalorder %s234, %s235
    %p249 = scmp.eq.s32.totalorder %s19, 1
    %p250 = por %p248, %p249
    %p252 = scmp.ne.s32.totalorder %s235, %s251
    %p253 = scmp.eq.s32.totalorder %s19, 0
    %p254 = por %p252, %p253
    %p255 = scmp.le.s32.totalorder 1, %s13
    %p256 = scmp.lt.s32.totalorder %s13, 3
    %p257 = pnand %p255, %p256
    %p258 = pneg %p257
    // Predicated region
    $region9: #{db_loss.1} parent=5 // pred_check
      _
    $region10: #{db_loss.1} parent=5 // pred_check_branch
      %260 = sbr.rel (%p257) target = $region12
    $region11: #{db_loss.1} parent=5 // pred_region
      %s261 = ssub.s32 %s13, 1
    $region12: #{db_loss.1} parent=5 // pred_fallthru
      _
    %p262 = scmp.lt.s32.totalorder %s13, 2
    // Predicated region
    $region13: #{db_loss.1} parent=5 // pred_check
      %p263 = pneg %p262
    $region14: #{db_loss.1} parent=5 // pred_check_branch
      %265 = sbr.rel (%p263) target = $region16
    $region15: #{db_loss.1} parent=5 // pred_region
      // Predicated region
      $region17: #{db_loss.1} parent=15 // pred_check
        %p266 = pneg %p47
      $region18: #{db_loss.1} parent=15 // pred_check_branch
        %268 = sbr.rel (%p266) target = $region20
      $region19: #{db_loss.1} parent=15 // pred_region
        %s269 = sadd.s32 %s20, %s21
        %p270 = scmp.lt.s32.totalorder %s269, 1
        %s271 = scalar_select %p270, %s269, 1
        %s272 = smul.addr %s271, 4
        %s273 = smul.addr %s272, 8
        %s274 = scalar_lea.vmem %s0, %s273
        %s275 = sadd.s32 %s20, %s21
      $region20: #{db_loss.1} parent=15 // pred_fallthru
        _
      // Predicated region
      $region21: #{db_loss.1} parent=15 // pred_check
        %p276 = pneg %p75
      $region22: #{db_loss.1} parent=15 // pred_check_branch
        %278 = sbr.rel (%p276) target = $region24
      $region23: #{db_loss.1} parent=15 // pred_region
        %s279 = sadd.s32 %s20, %s21
        %p280 = scmp.lt.s32.totalorder %s279, 1
        %s281 = scalar_select %p280, %s279, 1
        %s282 = smul.addr %s281, 4
        %s283 = smul.addr %s282, 8
        %s284 = scalar_lea.vmem %s1, %s283
        %s285 = sadd.s32 %s20, %s21
      $region24: #{db_loss.1} parent=15 // pred_fallthru
        _
      // Predicated region
      $region25: #{db_loss.1} parent=15 // pred_check
        %p286 = pneg %p103
      $region26: #{db_loss.1} parent=15 // pred_check_branch
        %288 = sbr.rel (%p286) target = $region28
      $region27: #{db_loss.1} parent=15 // pred_region
        %s289 = sadd.s32 %s20, %s21
        %p290 = scmp.lt.s32.totalorder %s289, 1
        %s291 = scalar_select %p290, %s289, 1
        %s292 = smul.addr %s291, 4
        %s293 = smul.addr %s292, 8
        %s294 = scalar_lea.vmem %s2, %s293
        %s295 = sadd.s32 %s20, %s21
      $region28: #{db_loss.1} parent=15 // pred_fallthru
        _
      // Predicated region
      $region29: #{db_loss.1} parent=15 // pred_check
        %p296 = pneg %p131
      $region30: #{db_loss.1} parent=15 // pred_check_branch
        %298 = sbr.rel (%p296) target = $region32
      $region31: #{db_loss.1} parent=15 // pred_region
        %s299 = sadd.s32 %s20, %s21
        %p300 = scmp.lt.s32.totalorder %s299, 1
        %s301 = scalar_select %p300, %s299, 1
        %s302 = smul.addr %s301, 4
        %s303 = smul.addr %s302, 8
        %s304 = scalar_lea.vmem %s3, %s303
        %s305 = sadd.s32 %s20, %s21
      $region32: #{db_loss.1} parent=15 // pred_fallthru
        _
      // Predicated region
      $region33: #{db_loss.1} parent=15 // pred_check
        %p306 = pneg %p159
      $region34: #{db_loss.1} parent=15 // pred_check_branch
        %308 = sbr.rel (%p306) target = $region36
      $region35: #{db_loss.1} parent=15 // pred_region
        %s309 = sadd.s32 %s20, %s21
        %p310 = scmp.lt.s32.totalorder %s309, 1
        %s311 = scalar_select %p310, %s309, 1
        %s312 = smul.addr %s311, 4
        %s313 = smul.addr %s312, 8
        %s314 = scalar_lea.vmem %s4, %s313
        %s315 = sadd.s32 %s20, %s21
      $region36: #{db_loss.1} parent=15 // pred_fallthru
        _
      // Predicated region
      $region37: #{db_loss.1} parent=15 // pred_check
        %p316 = pneg %p187
      $region38: #{db_loss.1} parent=15 // pred_check_branch
        %318 = sbr.rel (%p316) target = $region40
      $region39: #{db_loss.1} parent=15 // pred_region
        %s319 = sadd.s32 %s20, %s21
        %p320 = scmp.lt.s32.totalorder %s319, 1
        %s321 = scalar_select %p320, %s319, 1
        %s322 = smul.addr %s321, 4
        %s323 = smul.addr %s322, 8
        %s324 = scalar_lea.vmem %s5, %s323
        %s325 = sadd.s32 %s20, %s21
      $region40: #{db_loss.1} parent=15 // pred_fallthru
        _
      // Predicated region
      $region41: #{db_loss.1} parent=15 // pred_check
        %p326 = pneg %p215
      $region42: #{db_loss.1} parent=15 // pred_check_branch
        %328 = sbr.rel (%p326) target = $region44
      $region43: #{db_loss.1} parent=15 // pred_region
        %s329 = sadd.s32 %s20, %s21
        %p330 = scmp.lt.s32.totalorder %s329, 1
        %s331 = scalar_select %p330, %s329, 1
        %s332 = smul.addr %s331, 4
        %s333 = smul.addr %s332, 8
        %s334 = scalar_lea.vmem %s6, %s333
        %s335 = sadd.s32 %s20, %s21
      $region44: #{db_loss.1} parent=15 // pred_fallthru
        _
    $region16: #{db_loss.1} parent=5 // pred_fallthru
      _
    %p336 = scmp.le.s32.totalorder 1, %s13
    %p337 = scmp.lt.s32.totalorder %s13, 3
    %p338 = pnand %p336, %p337
    %p339 = pneg %p338
    // Predicated region
    $region45: #{db_loss.1} parent=5 // pred_check
      _
    $region46: #{db_loss.1} parent=5 // pred_check_branch
      %341 = sbr.rel (%p338) target = $region48
    $region47: #{db_loss.1} parent=5 // pred_region
      %s342 = ssub.s32 %s13, 1
      %s343 = sadd.s32 %s22, %s23
      %p344 = scmp.lt.s32.totalorder %s343, 1
      %s345 = scalar_select %p344, %s343, 1
      %s346 = smul.addr %s345, 4
      %s347 = smul.addr %s346, 8
      %s348 = scalar_lea.vmem %s0, %s347
      %p349 = pneg %p53
      %p350 = pneg %p50
      %s351 = sadd.s32 %s22, %s23
      %p352 = scmp.lt.s32.totalorder %s351, 1
      %s353 = scalar_select %p352, %s351, 1
      %s354 = smul.addr %s353, 4
      %s355 = smul.addr %s354, 8
      %s356 = scalar_lea.vmem %s1, %s355
      %p357 = pneg %p81
      %p358 = pneg %p78
      %s359 = sadd.s32 %s22, %s23
      %p360 = scmp.lt.s32.totalorder %s359, 1
      %s361 = scalar_select %p360, %s359, 1
      %s362 = smul.addr %s361, 4
      %s363 = smul.addr %s362, 8
      %s364 = scalar_lea.vmem %s2, %s363
      %p365 = pneg %p109
      %p366 = pneg %p106
      %s367 = sadd.s32 %s22, %s23
      %p368 = scmp.lt.s32.totalorder %s367, 1
      %s369 = scalar_select %p368, %s367, 1
      %s370 = smul.addr %s369, 4
      %s371 = smul.addr %s370, 8
      %s372 = scalar_lea.vmem %s3, %s371
      %p373 = pneg %p137
      %p374 = pneg %p134
      %s375 = sadd.s32 %s22, %s23
      %p376 = scmp.lt.s32.totalorder %s375, 1
      %s377 = scalar_select %p376, %s375, 1
      %s378 = smul.addr %s377, 4
      %s379 = smul.addr %s378, 8
      %s380 = scalar_lea.vmem %s4, %s379
      %p381 = pneg %p165
      %p382 = pneg %p162
      %s383 = sadd.s32 %s22, %s23
      %p384 = scmp.lt.s32.totalorder %s383, 1
      %s385 = scalar_select %p384, %s383, 1
      %s386 = smul.addr %s385, 4
      %s387 = smul.addr %s386, 8
      %s388 = scalar_lea.vmem %s5, %s387
      %p389 = pneg %p193
      %p390 = pneg %p190
      %s391 = sadd.s32 %s22, %s23
      %p392 = scmp.lt.s32.totalorder %s391, 1
      %s393 = scalar_select %p392, %s391, 1
      %s394 = smul.addr %s393, 4
      %s395 = smul.addr %s394, 8
      %s396 = scalar_lea.vmem %s6, %s395
      %p397 = pneg %p221
      %p398 = pneg %p218
      %p399 = pneg %p247
      %p400 = pneg %p244
      %p401 = scmp.lt.s32.totalorder %s22, 1
      %s402 = scalar_select %p401, %s22, 1
      %s403 = smul.addr %s402, 32
      %s404 = smul.addr %s403, 8
      %s405 = scalar_lea.vmem %s7, %s404
      %s406 = sadd.s32 %s22, %s23
      %p407 = scmp.lt.s32.totalorder %s406, 1
      %s408 = scalar_select %p407, %s406, 1
      %s409 = smul.addr %s408, 4
      %s410 = smul.addr %s409, 8
      %s411 = scalar_lea.vmem %s0, %s410
      %s412 = sadd.s32 %s22, %s23
      %s413 = sadd.s32 %s22, %s23
      %p414 = scmp.lt.s32.totalorder %s413, 1
      %s415 = scalar_select %p414, %s413, 1
      %s416 = smul.addr %s415, 4
      %s417 = smul.addr %s416, 8
      %s418 = scalar_lea.vmem %s1, %s417
      %s419 = sadd.s32 %s22, %s23
      %s420 = sadd.s32 %s22, %s23
      %p421 = scmp.lt.s32.totalorder %s420, 1
      %s422 = scalar_select %p421, %s420, 1
      %s423 = smul.addr %s422, 4
      %s424 = smul.addr %s423, 8
      %s425 = scalar_lea.vmem %s2, %s424
      %s426 = sadd.s32 %s22, %s23
      %s427 = sadd.s32 %s22, %s23
      %p428 = scmp.lt.s32.totalorder %s427, 1
      %s429 = scalar_select %p428, %s427, 1
      %s430 = smul.addr %s429, 4
      %s431 = smul.addr %s430, 8
      %s432 = scalar_lea.vmem %s3, %s431
      %s433 = sadd.s32 %s22, %s23
      %s434 = sadd.s32 %s22, %s23
      %p435 = scmp.lt.s32.totalorder %s434, 1
      %s436 = scalar_select %p435, %s434, 1
      %s437 = smul.addr %s436, 4
      %s438 = smul.addr %s437, 8
      %s439 = scalar_lea.vmem %s4, %s438
      %s440 = sadd.s32 %s22, %s23
      %s441 = sadd.s32 %s22, %s23
      %p442 = scmp.lt.s32.totalorder %s441, 1
      %s443 = scalar_select %p442, %s441, 1
      %s444 = smul.addr %s443, 4
      %s445 = smul.addr %s444, 8
      %s446 = scalar_lea.vmem %s5, %s445
      %s447 = sadd.s32 %s22, %s23
      %s448 = sadd.s32 %s22, %s23
      %p449 = scmp.lt.s32.totalorder %s448, 1
      %s450 = scalar_select %p449, %s448, 1
      %s451 = smul.addr %s450, 4
      %s452 = smul.addr %s451, 8
      %s453 = scalar_lea.vmem %s6, %s452
      %s454 = sadd.s32 %s22, %s23
      %p455 = scmp.lt.s32.totalorder %s22, 1
      %s456 = scalar_select %p455, %s22, 1
      %s457 = smul.addr %s456, 32
      %s458 = smul.addr %s457, 8
      %s459 = scalar_lea.vmem %s7, %s458
      %p460 = scmp.eq.s32.totalorder %s23, 0
      // Predicated region
      $region49: #{db_loss.1} parent=47 // pred_check
        %p461 = pneg %p460
      $region50: #{db_loss.1} parent=47 // pred_check_branch
        %463 = sbr.rel (%p461) target = $region52
      $region51: #{db_loss.1} parent=47 // pred_region
        %464 = vst [vmem:[%s459] sm:$0xff] 0.0
        %465 = vst [vmem:[%s459 + $0x8] sm:$0xff] 0.0
        %466 = vst [vmem:[%s459 + $0x10] sm:$0xff] 0.0
        %467 = vst [vmem:[%s459 + $0x18] sm:$0xff] 0.0
        %468 = vst [vmem:[%s459 + $0x20] sm:$0xff] 0.0
        %469 = vst [vmem:[%s459 + $0x28] sm:$0xff] 0.0
        %470 = vst [vmem:[%s459 + $0x30] sm:$0xff] 0.0
        %471 = vst [vmem:[%s459 + $0x38] sm:$0xff] 0.0
        %472 = vst [vmem:[%s459 + $0x40] sm:$0xff] 0.0
        %473 = vst [vmem:[%s459 + $0x48] sm:$0xff] 0.0
        %474 = vst [vmem:[%s459 + $0x50] sm:$0xff] 0.0
        %475 = vst [vmem:[%s459 + $0x58] sm:$0xff] 0.0
        %476 = vst [vmem:[%s459 + $0x60] sm:$0xff] 0.0
        %477 = vst [vmem:[%s459 + $0x68] sm:$0xff] 0.0
        %478 = vst [vmem:[%s459 + $0x70] sm:$0xff] 0.0
        %479 = vst [vmem:[%s459 + $0x78] sm:$0xff] 0.0
        %480 = vst [vmem:[%s459 + $0x80] sm:$0xff] 0.0
        %481 = vst [vmem:[%s459 + $0x88] sm:$0xff] 0.0
        %482 = vst [vmem:[%s459 + $0x90] sm:$0xff] 0.0
        %483 = vst [vmem:[%s459 + $0x98] sm:$0xff] 0.0
        %484 = vst [vmem:[%s459 + $0xa0] sm:$0xff] 0.0
        %485 = vst [vmem:[%s459 + $0xa8] sm:$0xff] 0.0
        %486 = vst [vmem:[%s459 + $0xb0] sm:$0xff] 0.0
        %487 = vst [vmem:[%s459 + $0xb8] sm:$0xff] 0.0
        %488 = vst [vmem:[%s459 + $0xc0] sm:$0xff] 0.0
        %489 = vst [vmem:[%s459 + $0xc8] sm:$0xff] 0.0
        %490 = vst [vmem:[%s459 + $0xd0] sm:$0xff] 0.0
        %491 = vst [vmem:[%s459 + $0xd8] sm:$0xff] 0.0
        %492 = vst [vmem:[%s459 + $0xe0] sm:$0xff] 0.0
        %493 = vst [vmem:[%s459 + $0xe8] sm:$0xff] 0.0
        %494 = vst [vmem:[%s459 + $0xf0] sm:$0xff] 0.0
        %495 = vst [vmem:[%s459 + $0xf8] sm:$0xff] 0.0
      $region52: #{db_loss.1} parent=47 // pred_fallthru
        _
      %v496 = vld [vmem:[%s411] sm:$0xff]
      %v497 = vld [vmem:[%s411 + $0x8] sm:$0xff]
      %v498 = vld [vmem:[%s411 + $0x10] sm:$0xff]
      %v499 = vld [vmem:[%s411 + $0x18] sm:$0xff]
      %v500 = vld [vmem:[%s418] sm:$0xff]
      %v501 = vld [vmem:[%s418 + $0x8] sm:$0xff]
      %v502 = vld [vmem:[%s418 + $0x10] sm:$0xff]
      %v503 = vld [vmem:[%s418 + $0x18] sm:$0xff]
      %v504 = vld [vmem:[%s425] sm:$0xff]
      %v505 = vld [vmem:[%s425 + $0x8] sm:$0xff]
      %v506 = vld [vmem:[%s425 + $0x10] sm:$0xff]
      %v507 = vld [vmem:[%s425 + $0x18] sm:$0xff]
      %v508 = vld [vmem:[%s432] sm:$0xff]
      %v509 = vld [vmem:[%s432 + $0x8] sm:$0xff]
      %v510 = vld [vmem:[%s432 + $0x10] sm:$0xff]
      %v511 = vld [vmem:[%s432 + $0x18] sm:$0xff]
      %v512 = vld [vmem:[%s439] sm:$0xff]
      %v513 = vld [vmem:[%s439 + $0x8] sm:$0xff]
      %v514 = vld [vmem:[%s439 + $0x10] sm:$0xff]
      %v515 = vld [vmem:[%s439 + $0x18] sm:$0xff]
      %v516 = vld [vmem:[%s446] sm:$0xff]
      %v517 = vld [vmem:[%s446 + $0x8] sm:$0xff]
      %v518 = vld [vmem:[%s446 + $0x10] sm:$0xff]
      %v519 = vld [vmem:[%s446 + $0x18] sm:$0xff]
      %v520 = vld [vmem:[%s453] sm:$0xff]
      %v521 = vld [vmem:[%s453 + $0x8] sm:$0xff]
      %v522 = vld [vmem:[%s453 + $0x10] sm:$0xff]
      %v523 = vld [vmem:[%s453 + $0x18] sm:$0xff]
      %v524 = vmul.f32 %v516, %v520
      %v525 = vmul.f32 %v517, %v521
      %v526 = vmul.f32 %v518, %v522
      %v527 = vmul.f32 %v519, %v523
      %v528 = vmul.f32 %v496, %v520
      %v529 = vmul.f32 %v497, %v521
      %v530 = vmul.f32 %v498, %v522
      %v531 = vmul.f32 %v499, %v523
      %v532 = vmul.f32 %v504, %v520
      %v533 = vmul.f32 %v505, %v521
      %v534 = vmul.f32 %v506, %v522
      %v535 = vmul.f32 %v507, %v523
      %v536 = vmul.f32 %v528, %v516
      %v537 = vmul.f32 %v529, %v517
      %v538 = vmul.f32 %v530, %v518
      %v539 = vmul.f32 %v531, %v519
      %v540 = vsub.f32 %v520, %v524
      %v541 = vsub.f32 %v521, %v525
      %v542 = vsub.f32 %v522, %v526
      %v543 = vsub.f32 %v523, %v527
      %v544 = vsub.f32 %v500, %v508
      %v545 = vsub.f32 %v501, %v509
      %v546 = vsub.f32 %v502, %v510
      %v547 = vsub.f32 %v503, %v511
      %v548 = vand.u32 2147483647, %v544
      %v549 = vand.u32 2147483647, %v545
      %v550 = vand.u32 2147483647, %v546
      %v551 = vand.u32 2147483647, %v547
      %v552 = vmul.f32 %v548, %v512
      %v553 = vmul.f32 %v549, %v513
      %v554 = vmul.f32 %v550, %v514
      %v555 = vmul.f32 %v551, %v515
      %v556 = vmul.f32 %v532, %v516
      %v557 = vmul.f32 %v533, %v517
      %v558 = vmul.f32 %v534, %v518
      %v559 = vmul.f32 %v535, %v519
      %v560 = vadd.f32 %v536, 0.0
      %v561 = vadd.f32 %v537, 0.0
      %v562 = vadd.f32 %v538, 0.0
      %v563 = vadd.f32 %v539, 0.0
      %v564 = vadd.f32 %v528, 0.0
      %v565 = vadd.f32 %v529, 0.0
      %v566 = vadd.f32 %v530, 0.0
      %v567 = vadd.f32 %v531, 0.0
      %v568 = vadd.f32 %v524, 0.0
      %v569 = vadd.f32 %v525, 0.0
      %v570 = vadd.f32 %v526, 0.0
      %v571 = vadd.f32 %v527, 0.0
      %v572 = vadd.f32 %v540, 0.0
      %v573 = vadd.f32 %v541, 0.0
      %v574 = vadd.f32 %v542, 0.0
      %v575 = vadd.f32 %v543, 0.0
      %v576 = vadd.f32 %v552, 0.0
      %v577 = vadd.f32 %v553, 0.0
      %v578 = vadd.f32 %v554, 0.0
      %v579 = vadd.f32 %v555, 0.0
      %v580 = vadd.f32 %v512, 0.0
      %v581 = vadd.f32 %v513, 0.0
      %v582 = vadd.f32 %v514, 0.0
      %v583 = vadd.f32 %v515, 0.0
      %v584 = vadd.f32 %v556, 0.0
      %v585 = vadd.f32 %v557, 0.0
      %v586 = vadd.f32 %v558, 0.0
      %v587 = vadd.f32 %v559, 0.0
      %v588 = vadd.f32 %v532, 0.0
      %v589 = vadd.f32 %v533, 0.0
      %v590 = vadd.f32 %v534, 0.0
      %v591 = vadd.f32 %v535, 0.0
      %v592 = vld [vmem:[%s459] sm:$0xff]
      %v593 = vld [vmem:[%s459 + $0x8] sm:$0xff]
      %v594 = vld [vmem:[%s459 + $0x10] sm:$0xff]
      %v595 = vld [vmem:[%s459 + $0x18] sm:$0xff]
      %v596 = vld [vmem:[%s459 + $0x20] sm:$0xff]
      %v597 = vld [vmem:[%s459 + $0x28] sm:$0xff]
      %v598 = vld [vmem:[%s459 + $0x30] sm:$0xff]
      %v599 = vld [vmem:[%s459 + $0x38] sm:$0xff]
      %v600 = vld [vmem:[%s459 + $0x40] sm:$0xff]
      %v601 = vld [vmem:[%s459 + $0x48] sm:$0xff]
      %v602 = vld [vmem:[%s459 + $0x50] sm:$0xff]
      %v603 = vld [vmem:[%s459 + $0x58] sm:$0xff]
      %v604 = vld [vmem:[%s459 + $0x60] sm:$0xff]
      %v605 = vld [vmem:[%s459 + $0x68] sm:$0xff]
      %v606 = vld [vmem:[%s459 + $0x70] sm:$0xff]
      %v607 = vld [vmem:[%s459 + $0x78] sm:$0xff]
      %v608 = vld [vmem:[%s459 + $0x80] sm:$0xff]
      %v609 = vld [vmem:[%s459 + $0x88] sm:$0xff]
      %v610 = vld [vmem:[%s459 + $0x90] sm:$0xff]
      %v611 = vld [vmem:[%s459 + $0x98] sm:$0xff]
      %v612 = vld [vmem:[%s459 + $0xa0] sm:$0xff]
      %v613 = vld [vmem:[%s459 + $0xa8] sm:$0xff]
      %v614 = vld [vmem:[%s459 + $0xb0] sm:$0xff]
      %v615 = vld [vmem:[%s459 + $0xb8] sm:$0xff]
      %v616 = vld [vmem:[%s459 + $0xc0] sm:$0xff]
      %v617 = vld [vmem:[%s459 + $0xc8] sm:$0xff]
      %v618 = vld [vmem:[%s459 + $0xd0] sm:$0xff]
      %v619 = vld [vmem:[%s459 + $0xd8] sm:$0xff]
      %v620 = vld [vmem:[%s459 + $0xe0] sm:$0xff]
      %v621 = vld [vmem:[%s459 + $0xe8] sm:$0xff]
      %v622 = vld [vmem:[%s459 + $0xf0] sm:$0xff]
      %v623 = vld [vmem:[%s459 + $0xf8] sm:$0xff]
      %v624 = vadd.f32 %v592, %v560
      %v625 = vadd.f32 %v593, %v561
      %v626 = vadd.f32 %v594, %v562
      %v627 = vadd.f32 %v595, %v563
      %v628 = vadd.f32 %v596, %v564
      %v629 = vadd.f32 %v597, %v565
      %v630 = vadd.f32 %v598, %v566
      %v631 = vadd.f32 %v599, %v567
      %v632 = vadd.f32 %v600, %v568
      %v633 = vadd.f32 %v601, %v569
      %v634 = vadd.f32 %v602, %v570
      %v635 = vadd.f32 %v603, %v571
      %v636 = vadd.f32 %v604, %v572
      %v637 = vadd.f32 %v605, %v573
      %v638 = vadd.f32 %v606, %v574
      %v639 = vadd.f32 %v607, %v575
      %v640 = vadd.f32 %v608, %v576
      %v641 = vadd.f32 %v609, %v577
      %v642 = vadd.f32 %v610, %v578
      %v643 = vadd.f32 %v611, %v579
      %v644 = vadd.f32 %v612, %v580
      %v645 = vadd.f32 %v613, %v581
      %v646 = vadd.f32 %v614, %v582
      %v647 = vadd.f32 %v615, %v583
      %v648 = vadd.f32 %v616, %v584
      %v649 = vadd.f32 %v617, %v585
      %v650 = vadd.f32 %v618, %v586
      %v651 = vadd.f32 %v619, %v587
      %v652 = vadd.f32 %v620, %v588
      %v653 = vadd.f32 %v621, %v589
      %v654 = vadd.f32 %v622, %v590
      %v655 = vadd.f32 %v623, %v591
      %656 = vst [vmem:[%s459] sm:$0xff] %v624
      %657 = vst [vmem:[%s459 + $0x8] sm:$0xff] %v625
      %658 = vst [vmem:[%s459 + $0x10] sm:$0xff] %v626
      %659 = vst [vmem:[%s459 + $0x18] sm:$0xff] %v627
      %660 = vst [vmem:[%s459 + $0x20] sm:$0xff] %v628
      %661 = vst [vmem:[%s459 + $0x28] sm:$0xff] %v629
      %662 = vst [vmem:[%s459 + $0x30] sm:$0xff] %v630
      %663 = vst [vmem:[%s459 + $0x38] sm:$0xff] %v631
      %664 = vst [vmem:[%s459 + $0x40] sm:$0xff] %v632
      %665 = vst [vmem:[%s459 + $0x48] sm:$0xff] %v633
      %666 = vst [vmem:[%s459 + $0x50] sm:$0xff] %v634
      %667 = vst [vmem:[%s459 + $0x58] sm:$0xff] %v635
      %668 = vst [vmem:[%s459 + $0x60] sm:$0xff] %v636
      %669 = vst [vmem:[%s459 + $0x68] sm:$0xff] %v637
      %670 = vst [vmem:[%s459 + $0x70] sm:$0xff] %v638
      %671 = vst [vmem:[%s459 + $0x78] sm:$0xff] %v639
      %672 = vst [vmem:[%s459 + $0x80] sm:$0xff] %v640
      %673 = vst [vmem:[%s459 + $0x88] sm:$0xff] %v641
      %674 = vst [vmem:[%s459 + $0x90] sm:$0xff] %v642
      %675 = vst [vmem:[%s459 + $0x98] sm:$0xff] %v643
      %676 = vst [vmem:[%s459 + $0xa0] sm:$0xff] %v644
      %677 = vst [vmem:[%s459 + $0xa8] sm:$0xff] %v645
      %678 = vst [vmem:[%s459 + $0xb0] sm:$0xff] %v646
      %679 = vst [vmem:[%s459 + $0xb8] sm:$0xff] %v647
      %680 = vst [vmem:[%s459 + $0xc0] sm:$0xff] %v648
      %681 = vst [vmem:[%s459 + $0xc8] sm:$0xff] %v649
      %682 = vst [vmem:[%s459 + $0xd0] sm:$0xff] %v650
      %683 = vst [vmem:[%s459 + $0xd8] sm:$0xff] %v651
      %684 = vst [vmem:[%s459 + $0xe0] sm:$0xff] %v652
      %685 = vst [vmem:[%s459 + $0xe8] sm:$0xff] %v653
      %686 = vst [vmem:[%s459 + $0xf0] sm:$0xff] %v654
      %687 = vst [vmem:[%s459 + $0xf8] sm:$0xff] %v655
      %p688 = scmp.lt.s32.totalorder %s22, 1
      %s689 = scalar_select %p688, %s22, 1
      %s690 = smul.addr %s689, 32
      %s691 = smul.addr %s690, 8
      %s692 = scalar_lea.vmem %s7, %s691
      // Predicated region
      $region53: #{db_loss.1} parent=47 // pred_check
        %p693 = pneg %p244
      $region54: #{db_loss.1} parent=47 // pred_check_branch
        %695 = sbr.rel (%p693) target = $region56
      $region55: #{db_loss.1} parent=47 // pred_region
        _
      $region56: #{db_loss.1} parent=47 // pred_fallthru
        _
    $region48: #{db_loss.1} parent=5 // pred_fallthru
      _
    %p696 = scmp.le.s32.totalorder 2, %s13
    // Predicated region
    $region57: #{db_loss.1} parent=5 // pred_check
      %p697 = pneg %p696
    $region58: #{db_loss.1} parent=5 // pred_check_branch
      %699 = sbr.rel (%p697) target = $region60
    $region59: #{db_loss.1} parent=5 // pred_region
      %s700 = ssub.s32 %s13, 2
      // Predicated region
      $region61: #{db_loss.1} parent=59 // pred_check
        %p701 = pneg %p250
      $region62: #{db_loss.1} parent=59 // pred_check_branch
        %703 = sbr.rel (%p701) target = $region64
      $region63: #{db_loss.1} parent=59 // pred_region
        %p704 = scmp.lt.s32.totalorder %s24, 1
        %s705 = scalar_select %p704, %s24, 1
        %s706 = smul.addr %s705, 32
        %s707 = smul.addr %s706, 8
        %s708 = scalar_lea.vmem %s7, %s707
      $region64: #{db_loss.1} parent=59 // pred_fallthru
        _
    $region60: #{db_loss.1} parent=5 // pred_fallthru
      _
  $region6: #{db_loss.1} parent=0 // loop_footer
    %s17 = sadd.s32 1, %s13
  $region7: #{db_loss.1} parent=0 // loop_footer_branch
    %12 = sbr.rel target = $region3
  $region8: #{db_loss.1} parent=0 // loop_exit
    _

</llo_original>
